<compile_context>
chip_gen: v7x
topology: tpu7x:2x2x1
jax: 0.10.0
libtpu: 0.0.40
codegen_flags: <defaults>
</compile_context>

<pallas_src>
import functools

import jax
import jax.numpy as jnp
from jax.experimental import pallas as pl
from jax.experimental.pallas import tpu as pltpu


def _round_up(n, m):
    return ((n + m - 1) // m) * m


def _largest_divisor_leq(n, cap):
    cap = max(1, min(n, cap))
    for d in range(cap, 0, -1):
        if n % d == 0:
            return d
    return 1


# ---------------------------------------------------------------------------
# Pass 1: squeeze — tiled spatial sum, f32 accumulator resident across axis 1.
# ---------------------------------------------------------------------------
def _pool_kernel(x_ref, sum_ref):
    # x_ref: (tr, thw) native dtype; sum_ref: (tr, 1) f32.
    @pl.when(pl.program_id(1) == 0)
    def _():
        sum_ref[...] = jnp.zeros_like(sum_ref)

    sum_ref[...] += jnp.sum(x_ref[...].astype(jnp.float32), axis=-1,
                            keepdims=True)


# ---------------------------------------------------------------------------
# Pass 2: excite — fc1 -> ReLU -> fc2 -> hardsigmoid.  One grid step, all B.
# ---------------------------------------------------------------------------
def _excite_kernel(pooled_ref, w1t_ref, w2t_ref, y_ref, *, inv_hw):
    pooled = pooled_ref[...] * inv_hw                           # (B, C) f32 mean
    h = jnp.dot(pooled, w1t_ref[...], preferred_element_type=jnp.float32)
    h = jnp.maximum(h, 0.0)                                     # ReLU
    y = jnp.dot(h, w2t_ref[...], preferred_element_type=jnp.float32)
    # PyTorch Hardsigmoid: clip((y + 3) / 6, 0, 1)
    y_ref[...] = jnp.clip((y + 3.0) * (1.0 / 6.0), 0.0, 1.0)


# ---------------------------------------------------------------------------
# Pass 3: scale — lane-dense broadcast multiply in the native dtype.
# ---------------------------------------------------------------------------
def _scale_kernel(x_ref, y_ref, o_ref):
    # No full-tile f32 upcast: multiply directly in the output dtype.
    o_ref[...] = x_ref[...] * y_ref[...].astype(o_ref.dtype)


def se_layer(x, w1, w2):
    """x: (B, C, H, W) NCHW.  w1: (C//r, C).  w2: (C, C//r).  Returns NCHW."""
    B, C, H, W = x.shape
    hw = H * W
    rows = B * C
    itemsize = jnp.dtype(x.dtype).itemsize

    # --- tile sizing: lane dim a large multiple of 128, ~2 MB input block ---
    hw_pad = _round_up(hw, 128)
    thw = 128 * _largest_divisor_leq(hw_pad // 128, 2048 // 128)
    rows_pad = _round_up(rows, 8)
    max_tr_units = max(1, (2 * 1024 * 1024) // (thw * itemsize * 8))
    tr = 8 * _largest_divisor_leq(rows_pad // 8, max_tr_units)

    x2d = x.reshape(rows, hw)
    if rows_pad != rows or hw_pad != hw:
        # Zero padding: pooled sums are unaffected; padded outputs are trimmed.
        x2d = jnp.pad(x2d, ((0, rows_pad - rows), (0, hw_pad - hw)))

    grid = (rows_pad // tr, hw_pad // thw)
    vmem_limit = 32 * 1024 * 1024

    # ---------------- Pass 1: pooled sums (B*C, 1) in f32 -------------------
    sums = pl.pallas_call(
        _pool_kernel,
        out_shape=jax.ShapeDtypeStruct((rows_pad, 1), jnp.float32),
        grid_spec=pltpu.PrefetchScalarGridSpec(
            num_scalar_prefetch=0,
            grid=grid,
            in_specs=[pl.BlockSpec((tr, thw), lambda i, j: (i, j))],
            out_specs=pl.BlockSpec((tr, 1), lambda i, j: (i, 0)),
        ),
        compiler_params=pltpu.CompilerParams(
            dimension_semantics=("parallel", "arbitrary"),
            vmem_limit_bytes=vmem_limit),
        cost_estimate=pl.CostEstimate(
            flops=rows * hw,
            transcendentals=0,
            bytes_accessed=rows_pad * hw_pad * itemsize + rows_pad * 4),
    )(x2d)

    # ---------------- Pass 2: excite MLP (runs once, all batches) -----------
    pooled = sums[:rows, 0].reshape(B, C)                # f32 spatial sums
    w1t = jnp.transpose(w1).astype(jnp.float32)          # (C, C_red) — transpose hoisted
    w2t = jnp.transpose(w2).astype(jnp.float32)          # (C_red, C)
    y = pl.pallas_call(
        functools.partial(_excite_kernel, inv_hw=1.0 / float(hw)),
        out_shape=jax.ShapeDtypeStruct((B, C), jnp.float32),
    )(pooled, w1t, w2t)

    # ---------------- Pass 3: broadcast scale (the memory-bound pass) -------
    y2d = y.reshape(rows, 1)
    if rows_pad != rows:
        y2d = jnp.pad(y2d, ((0, rows_pad - rows), (0, 0)))

    out2d = pl.pallas_call(
        _scale_kernel,
        out_shape=jax.ShapeDtypeStruct((rows_pad, hw_pad), x.dtype),
        grid_spec=pltpu.PrefetchScalarGridSpec(
            num_scalar_prefetch=0,
            grid=grid,
            in_specs=[pl.BlockSpec((tr, thw), lambda i, j: (i, j)),
                      pl.BlockSpec((tr, 1), lambda i, j: (i, 0))],
            out_specs=pl.BlockSpec((tr, thw), lambda i, j: (i, j)),
        ),
        compiler_params=pltpu.CompilerParams(
            dimension_semantics=("parallel", "parallel"),
            vmem_limit_bytes=vmem_limit),
        cost_estimate=pl.CostEstimate(
            flops=rows * hw,
            transcendentals=0,
            bytes_accessed=2 * rows_pad * hw_pad * itemsize + rows_pad * 4),
    )(x2d, y2d)

    return out2d[:rows, :hw].reshape(B, C, H, W)


def se_layer_reference(x, w1, w2):
    """Pure-JAX reference mirroring the PyTorch module."""
    B, C, H, W = x.shape
    y = jnp.mean(x.astype(jnp.float32), axis=(2, 3))             # (B, C)
    y = jnp.maximum(y @ w1.T, 0.0)                               # (B, C//r)
    y = y @ w2.T                                                 # (B, C)
    y = jnp.clip((y + 3.0) / 6.0, 0.0, 1.0)
    return (x * y[:, :, None, None]).astype(x.dtype)


if __name__ == "__main__":
    # Small shapes consistent with the module: B=2, C=4 (reduction=4 -> C//r=1), 16x16 spatial.
    B, C, H, W = 2, 4, 16, 16
    reduction = 4
    c_red = C // reduction

    key = jax.random.PRNGKey(0)
    kx, k1, k2 = jax.random.split(key, 3)
    x = jax.random.normal(kx, (B, C, H, W), dtype=jnp.float32)
    # PyTorch nn.Linear convention: weight shape (out, in), no bias.
    w1 = jax.random.normal(k1, (c_red, C), dtype=jnp.float32) * 0.5
    w2 = jax.random.normal(k2, (C, c_red), dtype=jnp.float32) * 0.5

    out = se_layer(x, w1, w2)
    out = jax.block_until_ready(out)

    ref = se_layer_reference(x, w1, w2)
    assert out.shape == (B, C, H, W)
    assert jnp.allclose(out, ref, atol=1e-5, rtol=1e-5), "mismatch vs reference"

    print("KERNEL_OK")
</pallas_src>

<mosaic_0001>
module attributes {stable_mosaic.version = 11 : i64} {
  func.func @_pool_kernel(%arg0: i32, %arg1: i32, %arg2: memref<8x256xf32, #tpu.memory_space<vmem>>, %arg3: memref<8x1xf32, #tpu.memory_space<vmem>>) attributes {dimension_semantics = [#tpu.dimension_semantics<parallel>, #tpu.dimension_semantics<arbitrary>], iteration_bounds = array<i64: 1, 1>, scalar_prefetch = 0 : i64, scratch_operands = 0 : i64, tpu.core_type = #tpu.core_type<tc>, window_params = [{transform_indices = @transform_0, window_bounds = array<i64: 8, 256>}, {transform_indices = @transform_1, window_bounds = array<i64: 8, 1>}]} {
    %c0_i32 = arith.constant 0 : i32
    %0 = arith.cmpi eq, %arg1, %c0_i32 : i32
    %1 = arith.extui %0 : i1 to i32
    %c0_i32_0 = arith.constant 0 : i32
    %2 = arith.cmpi ne, %1, %c0_i32_0 : i32
    scf.if %2 {
      %cst_6 = arith.constant 0.000000e+00 : f32
      %9 = vector.broadcast %cst_6 : f32 to vector<8x1xf32>
      %c0_7 = arith.constant 0 : index
      %c0_8 = arith.constant 0 : index
      %10 = vector.load %arg3[%c0_7, %c0_8] : memref<8x1xf32, #tpu.memory_space<vmem>>, vector<8x1xf32>
      tpu.vector_store %arg3[%c0_7, %c0_8], %9 {strides = array<i32>} : memref<8x1xf32, #tpu.memory_space<vmem>>, vector<8x1xf32>,
    } else {
    }
    %c0 = arith.constant 0 : index
    %c0_1 = arith.constant 0 : index
    %3 = vector.load %arg3[%c0, %c0_1] : memref<8x1xf32, #tpu.memory_space<vmem>>, vector<8x1xf32>
    %c0_2 = arith.constant 0 : index
    %c0_3 = arith.constant 0 : index
    %4 = vector.load %arg2[%c0_2, %c0_3] : memref<8x256xf32, #tpu.memory_space<vmem>>, vector<8x256xf32>
    %cst = arith.constant dense<0.000000e+00> : vector<8xf32>
    %5 = vector.multi_reduction <add>, %4, %cst [1] : vector<8x256xf32> to vector<8xf32>
    %6 = vector.shape_cast %5 : vector<8xf32> to vector<8x1xf32>
    %7 = arith.addf %3, %6 : vector<8x1xf32>
    %c0_4 = arith.constant 0 : index
    %c0_5 = arith.constant 0 : index
    %8 = vector.load %arg3[%c0_4, %c0_5] : memref<8x1xf32, #tpu.memory_space<vmem>>, vector<8x1xf32>
    tpu.vector_store %arg3[%c0_4, %c0_5], %7 {strides = array<i32>} : memref<8x1xf32, #tpu.memory_space<vmem>>, vector<8x1xf32>,
    return
  }
  func.func @transform_0(%arg0: i32, %arg1: i32) -> (i32, i32) {
    %c0_i32 = arith.constant 0 : i32
    return %arg0, %arg1 : i32, i32
  }
  func.func @transform_1(%arg0: i32, %arg1: i32) -> (i32, i32) {
    %c0_i32 = arith.constant 0 : i32
    %c0_i32_0 = arith.constant 0 : i32
    return %arg0, %c0_i32 : i32, i32
  }
}

</mosaic_0001>

<llo_original>
// kernel: tpu_custom_call.1
$region0: #{tpu_custom_call.1}
  #allocation0 [shape = 'u32[]', space=smem, size = 0x4, offset = 0x4, fixed_abs, tag = 'smem constant byte address 0x4 - core index']
  #allocation1 [shape = 'u32[144,128]{1,0:T(1,128)}', space=vmem, size = 0x12000, scoped, tag = 'internal scratch']
  %s0 = inlined_call_operand.hbm [shape: f32[8,256], index: 0, kind: input, shape index: {}]
  %s1 = inlined_call_operand.vmem [shape: f32[8,1], index: 1, kind: output, shape index: {}]
  %s2 = sld [smem:[#allocation0]]
  $region22: #{tpu_custom_call.1} parent=0
    _
  %s4 = ssub.s32 1, %s2
  %s5 = scalar_select 0, %s4, %s2
  $region1: #{tpu_custom_call.1} parent=0
    #allocation2 [shape = 'u8[8192]{0}', space=vmem, size = 0x2000, scoped, tag = 'input window, operand 0, single buffered']
    #allocation3 [shape = 's32[1]{0}', space=sflag, size = 0x4, scoped, tag = 'scoped memory for tpu_custom_call.1']
    %6 = vsyncpa [#allocation3], 0
    // Predicated region
    $region2: #{tpu_custom_call.1} parent=1 // pred_check
      _
    $region3: #{tpu_custom_call.1} parent=1 // pred_check_branch
      %8 = sbr.rel (0) target = $region5
    $region4: #{tpu_custom_call.1} parent=1 // pred_region
      %s10 = ssub.s32 256, 256
      %11 = vsyncadd [#allocation3], %s10
      %s13 = sshll.u32 [#allocation2], 4
      %s14 = int_to_ptr.vmem [resolvable:$true] %s13
      %16 = dma.hbm_to_vmem [thread:$0]  %s0, 256, %s14, [#allocation3]
    $region5: #{tpu_custom_call.1} parent=1 // pred_fallthru
      _
    // Predicated region
    $region6: #{tpu_custom_call.1} parent=1 // pred_check
      _
    $region7: #{tpu_custom_call.1} parent=1 // pred_check_branch
      %18 = sbr.rel (0) target = $region9
    $region8: #{tpu_custom_call.1} parent=1 // pred_region
      %19 = dma.done [#allocation3], 256
    $region9: #{tpu_custom_call.1} parent=1 // pred_fallthru
      _
    %p20 = scmp.eq.s32.totalorder 0, 0
    // Predicated region
    $region10: #{tpu_custom_call.1} parent=1 // pred_check
      %p21 = pneg %p20
    $region11: #{tpu_custom_call.1} parent=1 // pred_check_branch
      %23 = sbr.rel (%p21) target = $region13
    $region12: #{tpu_custom_call.1} parent=1 // pred_region
      %vm24 = vcmask 7168
      %25 = vst.msk [vmem:[%s1] sm:$0xff] %vm24, 0.0
    $region13: #{tpu_custom_call.1} parent=1 // pred_fallthru
      _
    %v26 = vld [vmem:[%s1] sm:$0xff]
    %v27 = vld [vmem:[#allocation2] sm:$0xff]
    %v28 = vld [vmem:[#allocation2 + $0x8] sm:$0xff]
    %v29 = vadd.f32 %v27, %v28
    %30 = vadd.xlane.f32.xlu0 %v29
    %v31 = vpop.xlane.xlu0 %30
    %v32 = vadd.f32 %v26, %v31
    %vm33 = vcmask 7168
    %34 = vst.msk [vmem:[%s1] sm:$0xff] %vm33, %v32
    // Predicated region
    $region14: #{tpu_custom_call.1} parent=1 // pred_check
      _
    $region15: #{tpu_custom_call.1} parent=1 // pred_check_branch
      %36 = sbr.rel (0) target = $region17
    $region16: #{tpu_custom_call.1} parent=1 // pred_region
      _
    $region17: #{tpu_custom_call.1} parent=1 // pred_fallthru
      _
    // Predicated region
    $region18: #{tpu_custom_call.1} parent=1 // pred_check
      _
    $region19: #{tpu_custom_call.1} parent=1 // pred_check_branch
      %38 = sbr.rel (0) target = $region21
    $region20: #{tpu_custom_call.1} parent=1 // pred_region
      _
    $region21: #{tpu_custom_call.1} parent=1 // pred_fallthru
      _
    %39 = vsyncpa [#allocation3], 1

</llo_original>
